<compile_context>
chip_gen: v5e
topology: v5e:2x2
jax: 0.10.0
libtpu: 0.0.40
codegen_flags: <defaults>
</compile_context>

<pallas_src>
import jax
import jax.numpy as jnp
from jax.experimental import pallas as pl
from jax.experimental.pallas import tpu as pltpu

LANE = 128          # TPU lane width; hidden/output feature dims padded to this.
IN_FEATURES = 100
OUT_FEATURES = 100


def _round_up(n, m):
    return ((n + m - 1) // m) * m


def _cdiv(a, b):
    return (a + b - 1) // b


def ae_kernel(x_ref, w1_ref, b1_ref, w2_ref, b2_ref,
              w3_ref, b3_ref, w4_ref, b4_ref, o_ref):
    # Hoist bias loads so their sublane-broadcast reads overlap MXU latency.
    b1 = b1_ref[...]
    b2 = b2_ref[...]
    b3 = b3_ref[...]
    b4 = b4_ref[...]

    x = x_ref[...]  # (tile_b, 100): masked vld, no HBM pre-pad pass needed.
    # Encoder
    h = jnp.maximum(jnp.dot(x, w1_ref[...], preferred_element_type=jnp.float32) + b1, 0.0)
    h = jnp.maximum(jnp.dot(h, w2_ref[...], preferred_element_type=jnp.float32) + b2, 0.0)
    # Decoder
    h = jnp.maximum(jnp.dot(h, w3_ref[...], preferred_element_type=jnp.float32) + b3, 0.0)
    h = jnp.maximum(jnp.dot(h, w4_ref[...], preferred_element_type=jnp.float32) + b4, 0.0)
    o_ref[...] = h.astype(o_ref.dtype)  # lane-dense (tile_b, 128) store


def _pad2(a, shape):
    """Zero-pad a 2D array up to `shape` (top-left aligned)."""
    out = jnp.zeros(shape, a.dtype)
    return out.at[: a.shape[0], : a.shape[1]].set(a)


def prepare_params(params):
    """Pad weights/biases to lane-dense shapes ONCE, outside the hot path.

    Zero padding is numerically exact through relu: padded input columns hit
    zero weight rows, padded bias entries are zero, so padded activation
    columns stay exactly 0 through every layer.
    """
    w1, b1 = params["e1"]
    w2, b2 = params["e2"]
    w3, b3 = params["d1"]
    w4, b4 = params["d2"]
    return (
        _pad2(w1, (w1.shape[0], LANE)), _pad2(b1, (1, LANE)),   # (100, 128)
        _pad2(w2, (LANE, LANE)),        _pad2(b2, (1, LANE)),   # (128, 128)
        _pad2(w3, (LANE, LANE)),        _pad2(b3, (1, LANE)),
        _pad2(w4, (LANE, LANE)),        _pad2(b4, (1, LANE)),
    )


def autoencoder_forward(x, padded_params, *, tile_b_max=1024, keep_padded=False):
    """x: [B, 100] float32.  padded_params: output of prepare_params().

    keep_padded=True returns the lane-dense (B, 128) buffer (cols 100..127 are
    exactly zero) and skips the extra HBM pass of the final slice.
    """
    B, f_in = x.shape
    (w1p, b1p, w2p, b2p, w3p, b3p, w4p, b4p) = padded_params

    # Batch tile: as large as useful (fewer grid steps), but matched to B so
    # the ragged last tile wastes as little padding as possible.
    n_tiles = max(1, _cdiv(B, tile_b_max))
    tile_b = _round_up(_cdiv(B, n_tiles), 8)   # sublane-aligned
    grid = (_cdiv(B, tile_b),)                 # ragged last tile is masked by Pallas

    x_spec = pl.BlockSpec((tile_b, f_in), lambda i: (i, 0))     # full last dim (100)
    out_spec = pl.BlockSpec((tile_b, LANE), lambda i: (i, 0))   # lane-dense store
    w1_spec = pl.BlockSpec((f_in, LANE), lambda i: (0, 0))      # VMEM-resident
    w_spec = pl.BlockSpec((LANE, LANE), lambda i: (0, 0))
    bias_spec = pl.BlockSpec((1, LANE), lambda i: (0, 0))

    out = pl.pallas_call(
        ae_kernel,
        out_shape=jax.ShapeDtypeStruct((B, LANE), x.dtype),
        grid=grid,
        in_specs=[x_spec,
                  w1_spec, bias_spec,
                  w_spec, bias_spec,
                  w_spec, bias_spec,
                  w_spec, bias_spec],
        out_specs=out_spec,
        compiler_params=pltpu.CompilerParams(
            # For v7x, pltpu.CORE_PARALLEL here gets both TCs on the batch grid.
            dimension_semantics=("parallel",)),
    )(x, w1p, b1p, w2p, b2p, w3p, b3p, w4p, b4p)

    if keep_padded:
        return out                     # (B, 128), cols 100..127 exactly zero
    return out[:, :OUT_FEATURES]       # exact module semantics: (B, 100)


def init_linear(key, fan_in, fan_out):
    """Deterministic init mimicking PyTorch nn.Linear default (U(-1/sqrt(fan_in), +))."""
    kw, kb = jax.random.split(key)
    bound = 1.0 / jnp.sqrt(jnp.float32(fan_in))
    # Stored as [fan_in, fan_out] (transposed vs. PyTorch) for x @ W.
    w = jax.random.uniform(kw, (fan_in, fan_out), jnp.float32, -bound, bound)
    b = jax.random.uniform(kb, (1, fan_out), jnp.float32, -bound, bound)
    return w, b


def reference_forward(x, params):
    h = x
    for name in ("e1", "e2", "d1", "d2"):
        w, b = params[name]
        h = jnp.maximum(h @ w + b, 0.0)
    return h


if __name__ == "__main__":
    key = jax.random.PRNGKey(0)
    k_x, k1, k2, k3, k4 = jax.random.split(key, 5)

    B = 8  # small batch for the correctness check
    x = jax.random.normal(k_x, (B, 100), jnp.float32)

    params = {
        "e1": init_linear(k1, 100, 80),
        "e2": init_linear(k2, 80, 20),
        "d1": init_linear(k3, 20, 80),
        "d2": init_linear(k4, 80, 100),
    }

    # Pad parameters once, outside the hot path.
    padded = prepare_params(params)
    padded = jax.block_until_ready(padded)

    out = autoencoder_forward(x, padded)
    out = jax.block_until_ready(out)

    ref = reference_forward(x, params)
    assert out.shape == (B, 100), out.shape
    assert jnp.allclose(out, ref, atol=1e-5, rtol=1e-5), "mismatch vs JAX reference"

    print("KERNEL_OK")
</pallas_src>

<mosaic_0001>
module attributes {stable_mosaic.version = 11 : i64} {
  func.func @ae_kernel(%arg0: i32, %arg1: memref<8x100xf32, #tpu.memory_space<vmem>>, %arg2: memref<100x128xf32, #tpu.memory_space<vmem>>, %arg3: memref<1x128xf32, #tpu.memory_space<vmem>>, %arg4: memref<128x128xf32, #tpu.memory_space<vmem>>, %arg5: memref<1x128xf32, #tpu.memory_space<vmem>>, %arg6: memref<128x128xf32, #tpu.memory_space<vmem>>, %arg7: memref<1x128xf32, #tpu.memory_space<vmem>>, %arg8: memref<128x128xf32, #tpu.memory_space<vmem>>, %arg9: memref<1x128xf32, #tpu.memory_space<vmem>>, %arg10: memref<8x128xf32, #tpu.memory_space<vmem>>) attributes {dimension_semantics = [#tpu.dimension_semantics<parallel>], iteration_bounds = array<i64: 1>, scalar_prefetch = 0 : i64, scratch_operands = 0 : i64, tpu.core_type = #tpu.core_type<tc>, window_params = [{transform_indices = @transform_0, window_bounds = array<i64: 8, 100>}, {pipeline_mode = #tpu.pipeline_mode<synchronous>, transform_indices = @transform_1, window_bounds = array<i64: 100, 128>}, {pipeline_mode = #tpu.pipeline_mode<synchronous>, transform_indices = @transform_2, window_bounds = array<i64: 1, 128>}, {pipeline_mode = #tpu.pipeline_mode<synchronous>, transform_indices = @transform_3, window_bounds = array<i64: 128, 128>}, {pipeline_mode = #tpu.pipeline_mode<synchronous>, transform_indices = @transform_4, window_bounds = array<i64: 1, 128>}, {pipeline_mode = #tpu.pipeline_mode<synchronous>, transform_indices = @transform_5, window_bounds = array<i64: 128, 128>}, {pipeline_mode = #tpu.pipeline_mode<synchronous>, transform_indices = @transform_6, window_bounds = array<i64: 1, 128>}, {pipeline_mode = #tpu.pipeline_mode<synchronous>, transform_indices = @transform_7, window_bounds = array<i64: 128, 128>}, {pipeline_mode = #tpu.pipeline_mode<synchronous>, transform_indices = @transform_8, window_bounds = array<i64: 1, 128>}, {transform_indices = @transform_9, window_bounds = array<i64: 8, 128>}]} {
    %c0 = arith.constant 0 : index
    %c0_0 = arith.constant 0 : index
    %0 = vector.load %arg3[%c0, %c0_0] : memref<1x128xf32, #tpu.memory_space<vmem>>, vector<1x128xf32>
    %c0_1 = arith.constant 0 : index
    %c0_2 = arith.constant 0 : index
    %1 = vector.load %arg5[%c0_1, %c0_2] : memref<1x128xf32, #tpu.memory_space<vmem>>, vector<1x128xf32>
    %c0_3 = arith.constant 0 : index
    %c0_4 = arith.constant 0 : index
    %2 = vector.load %arg7[%c0_3, %c0_4] : memref<1x128xf32, #tpu.memory_space<vmem>>, vector<1x128xf32>
    %c0_5 = arith.constant 0 : index
    %c0_6 = arith.constant 0 : index
    %3 = vector.load %arg9[%c0_5, %c0_6] : memref<1x128xf32, #tpu.memory_space<vmem>>, vector<1x128xf32>
    %c0_7 = arith.constant 0 : index
    %c0_8 = arith.constant 0 : index
    %4 = vector.load %arg1[%c0_7, %c0_8] : memref<8x100xf32, #tpu.memory_space<vmem>>, vector<8x100xf32>
    %c0_9 = arith.constant 0 : index
    %c0_10 = arith.constant 0 : index
    %5 = vector.load %arg2[%c0_9, %c0_10] : memref<100x128xf32, #tpu.memory_space<vmem>>, vector<100x128xf32>
    %cst = arith.constant dense<0.000000e+00> : vector<8x128xf32>
    %6 = tpu.matmul %4, %5, %cst {dimension_numbers = #tpu.dot_dimension_numbers<[1], [0], [0], [1], [0, 0, 1, 1], [], []>} : vector<8x100xf32>, vector<100x128xf32>, vector<8x128xf32> -> vector<8x128xf32>
    %7 = vector.broadcast %0 : vector<1x128xf32> to vector<8x128xf32>
    %8 = arith.addf %6, %7 : vector<8x128xf32>
    %cst_11 = arith.constant 0.000000e+00 : f32
    %9 = vector.broadcast %cst_11 : f32 to vector<8x128xf32>
    %10 = arith.maximumf %8, %9 : vector<8x128xf32>
    %c0_12 = arith.constant 0 : index
    %c0_13 = arith.constant 0 : index
    %11 = vector.load %arg4[%c0_12, %c0_13] : memref<128x128xf32, #tpu.memory_space<vmem>>, vector<128x128xf32>
    %cst_14 = arith.constant dense<0.000000e+00> : vector<8x128xf32>
    %12 = tpu.matmul %10, %11, %cst_14 {dimension_numbers = #tpu.dot_dimension_numbers<[1], [0], [0], [1], [0, 0, 1, 1], [], []>} : vector<8x128xf32>, vector<128x128xf32>, vector<8x128xf32> -> vector<8x128xf32>
    %13 = vector.broadcast %1 : vector<1x128xf32> to vector<8x128xf32>
    %14 = arith.addf %12, %13 : vector<8x128xf32>
    %cst_15 = arith.constant 0.000000e+00 : f32
    %15 = vector.broadcast %cst_15 : f32 to vector<8x128xf32>
    %16 = arith.maximumf %14, %15 : vector<8x128xf32>
    %c0_16 = arith.constant 0 : index
    %c0_17 = arith.constant 0 : index
    %17 = vector.load %arg6[%c0_16, %c0_17] : memref<128x128xf32, #tpu.memory_space<vmem>>, vector<128x128xf32>
    %cst_18 = arith.constant dense<0.000000e+00> : vector<8x128xf32>
    %18 = tpu.matmul %16, %17, %cst_18 {dimension_numbers = #tpu.dot_dimension_numbers<[1], [0], [0], [1], [0, 0, 1, 1], [], []>} : vector<8x128xf32>, vector<128x128xf32>, vector<8x128xf32> -> vector<8x128xf32>
    %19 = vector.broadcast %2 : vector<1x128xf32> to vector<8x128xf32>
    %20 = arith.addf %18, %19 : vector<8x128xf32>
    %cst_19 = arith.constant 0.000000e+00 : f32
    %21 = vector.broadcast %cst_19 : f32 to vector<8x128xf32>
    %22 = arith.maximumf %20, %21 : vector<8x128xf32>
    %c0_20 = arith.constant 0 : index
    %c0_21 = arith.constant 0 : index
    %23 = vector.load %arg8[%c0_20, %c0_21] : memref<128x128xf32, #tpu.memory_space<vmem>>, vector<128x128xf32>
    %cst_22 = arith.constant dense<0.000000e+00> : vector<8x128xf32>
    %24 = tpu.matmul %22, %23, %cst_22 {dimension_numbers = #tpu.dot_dimension_numbers<[1], [0], [0], [1], [0, 0, 1, 1], [], []>} : vector<8x128xf32>, vector<128x128xf32>, vector<8x128xf32> -> vector<8x128xf32>
    %25 = vector.broadcast %3 : vector<1x128xf32> to vector<8x128xf32>
    %26 = arith.addf %24, %25 : vector<8x128xf32>
    %cst_23 = arith.constant 0.000000e+00 : f32
    %27 = vector.broadcast %cst_23 : f32 to vector<8x128xf32>
    %28 = arith.maximumf %26, %27 : vector<8x128xf32>
    %c0_24 = arith.constant 0 : index
    %c0_25 = arith.constant 0 : index
    %29 = vector.load %arg10[%c0_24, %c0_25] : memref<8x128xf32, #tpu.memory_space<vmem>>, vector<8x128xf32>
    tpu.vector_store %arg10[%c0_24, %c0_25], %28 {strides = array<i32>} : memref<8x128xf32, #tpu.memory_space<vmem>>, vector<8x128xf32>,
    return
  }
  func.func @transform_0(%arg0: i32) -> (i32, i32) {
    %c0_i32 = arith.constant 0 : i32
    %c0_i32_0 = arith.constant 0 : i32
    return %arg0, %c0_i32 : i32, i32
  }
  func.func @transform_1(%arg0: i32) -> (i32, i32) {
    %c0_i32 = arith.constant 0 : i32
    %c0_i32_0 = arith.constant 0 : i32
    %c0_i32_1 = arith.constant 0 : i32
    return %c0_i32, %c0_i32_0 : i32, i32
  }
  func.func @transform_2(%arg0: i32) -> (i32, i32) {
    %c0_i32 = arith.constant 0 : i32
    %c0_i32_0 = arith.constant 0 : i32
    %c0_i32_1 = arith.constant 0 : i32
    return %c0_i32, %c0_i32_0 : i32, i32
  }
  func.func @transform_3(%arg0: i32) -> (i32, i32) {
    %c0_i32 = arith.constant 0 : i32
    %c0_i32_0 = arith.constant 0 : i32
    %c0_i32_1 = arith.constant 0 : i32
    return %c0_i32, %c0_i32_0 : i32, i32
  }
  func.func @transform_4(%arg0: i32) -> (i32, i32) {
    %c0_i32 = arith.constant 0 : i32
    %c0_i32_0 = arith.constant 0 : i32
    %c0_i32_1 = arith.constant 0 : i32
    return %c0_i32, %c0_i32_0 : i32, i32
  }
  func.func @transform_5(%arg0: i32) -> (i32, i32) {
    %c0_i32 = arith.constant 0 : i32
    %c0_i32_0 = arith.constant 0 : i32
    %c0_i32_1 = arith.constant 0 : i32
    return %c0_i32, %c0_i32_0 : i32, i32
  }
  func.func @transform_6(%arg0: i32) -> (i32, i32) {
    %c0_i32 = arith.constant 0 : i32
    %c0_i32_0 = arith.constant 0 : i32
    %c0_i32_1 = arith.constant 0 : i32
    return %c0_i32, %c0_i32_0 : i32, i32
  }
  func.func @transform_7(%arg0: i32) -> (i32, i32) {
    %c0_i32 = arith.constant 0 : i32
    %c0_i32_0 = arith.constant 0 : i32
    %c0_i32_1 = arith.constant 0 : i32
    return %c0_i32, %c0_i32_0 : i32, i32
  }
  func.func @transform_8(%arg0: i32) -> (i32, i32) {
    %c0_i32 = arith.constant 0 : i32
    %c0_i32_0 = arith.constant 0 : i32
    %c0_i32_1 = arith.constant 0 : i32
    return %c0_i32, %c0_i32_0 : i32, i32
  }
  func.func @transform_9(%arg0: i32) -> (i32, i32) {
    %c0_i32 = arith.constant 0 : i32
    %c0_i32_0 = arith.constant 0 : i32
    return %arg0, %c0_i32 : i32, i32
  }
}

</mosaic_0001>

<llo_original>
// kernel: tpu_custom_call.1
$region0: #{tpu_custom_call.1}
  #allocation0 [shape = 'u32[]', space=smem, size = 0x4, offset = 0x4, fixed_abs, tag = 'smem constant byte address 0x4 - core index']
  #allocation1 [shape = 'u32[72,128]{1,0:T(1,128)}', space=vmem, size = 0x9000, scoped, tag = 'internal scratch']
  %s0 = inlined_call_operand.hbm [shape: f32[8,100], index: 0, kind: input, shape index: {}]
  %s1 = inlined_call_operand.hbm [shape: f32[100,128], index: 1, kind: input, shape index: {}]
  %s2 = inlined_call_operand.vmem [shape: f32[1,128], index: 2, kind: input, shape index: {}]
  %s3 = inlined_call_operand.hbm [shape: f32[128,128], index: 3, kind: input, shape index: {}]
  %s4 = inlined_call_operand.vmem [shape: f32[1,128], index: 4, kind: input, shape index: {}]
  %s5 = inlined_call_operand.hbm [shape: f32[128,128], index: 5, kind: input, shape index: {}]
  %s6 = inlined_call_operand.vmem [shape: f32[1,128], index: 6, kind: input, shape index: {}]
  %s7 = inlined_call_operand.hbm [shape: f32[128,128], index: 7, kind: input, shape index: {}]
  %s8 = inlined_call_operand.vmem [shape: f32[1,128], index: 8, kind: input, shape index: {}]
  %s9 = inlined_call_operand.hbm [shape: f32[8,128], index: 9, kind: output, shape index: {}]
  %s10 = sld [smem:[#allocation0]]
  $region66: #{tpu_custom_call.1} parent=0
    _
  %s12 = ssub.s32 1, %s10
  %s13 = scalar_select 0, %s12, %s10
  $region1: #{tpu_custom_call.1} parent=0
    #allocation2 [shape = 'u8[4096]{0}', space=vmem, size = 0x1000, scoped, tag = 'input window, operand 0, single buffered']
    #allocation3 [shape = 's32[1]{0}', space=sflag, size = 0x4, scoped, tag = 'scoped memory for tpu_custom_call.1']
    #allocation4 [shape = 's32[1]{0}', space=sflag, size = 0x4, scoped, tag = 'scoped memory for tpu_custom_call.1']
    #allocation5 [shape = 'u8[53248]{0}', space=vmem, size = 0xd000, scoped, tag = 'input window, operand 1, single buffered']
    #allocation6 [shape = 's32[1]{0}', space=sflag, size = 0x4, scoped, tag = 'scoped memory for tpu_custom_call.1']
    #allocation7 [shape = 'u8[65536]{0}', space=vmem, size = 0x10000, scoped, tag = 'input window, operand 3, single buffered']
    #allocation8 [shape = 'u8[65536]{0}', space=vmem, size = 0x10000, scoped, tag = 'input window, operand 5, single buffered']
    #allocation9 [shape = 's32[1]{0}', space=sflag, size = 0x4, scoped, tag = 'scoped memory for tpu_custom_call.1']
    #allocation10 [shape = 'u8[65536]{0}', space=vmem, size = 0x10000, scoped, tag = 'input window, operand 7, single buffered']
    #allocation11 [shape = 'u8[4096]{0}', space=vmem, size = 0x1000, scoped, tag = 'output window, operand 0, single buffered']
    %14 = vsyncpa [#allocation3], 0
    %15 = vsyncpa [#allocation6], 0
    %16 = vsyncpa [#allocation9], 0
    %17 = vsyncpa [#allocation4], 0
    // Predicated region
    $region2: #{tpu_custom_call.1} parent=1 // pred_check
      _
    $region3: #{tpu_custom_call.1} parent=1 // pred_check_branch
      %19 = sbr.rel (0) target = $region5
    $region4: #{tpu_custom_call.1} parent=1 // pred_region
      %21 = vsyncadd [#allocation3], 0
      %s23 = sshll.u32 %s0, 4
      %s24 = int_to_ptr.hbm [resolvable:$true] %s23
      %s25 = sshll.u32 [#allocation2], 4
      %s26 = int_to_ptr.vmem [resolvable:$true] %s25
      %28 = dma.hbm_to_vmem [thread:$0]  %s24, 128, %s26, [#allocation3]
    $region5: #{tpu_custom_call.1} parent=1 // pred_fallthru
      _
    // Predicated region
    $region6: #{tpu_custom_call.1} parent=1 // pred_check
      _
    $region7: #{tpu_custom_call.1} parent=1 // pred_check_branch
      %30 = sbr.rel (0) target = $region9
    $region8: #{tpu_custom_call.1} parent=1 // pred_region
      %32 = vsyncadd [#allocation6], 0
      %s33 = sshll.u32 %s1, 4
      %s34 = int_to_ptr.hbm [resolvable:$true] %s33
      %s35 = sshll.u32 [#allocation5], 4
      %s36 = int_to_ptr.vmem [resolvable:$true] %s35
      %41 = dma.hbm_to_vmem [thread:$0]  %s34, 1664, %s36, [#allocation6], 128, 128, 8
    $region9: #{tpu_custom_call.1} parent=1 // pred_fallthru
      _
    // Predicated region
    $region10: #{tpu_custom_call.1} parent=1 // pred_check
      _
    $region11: #{tpu_custom_call.1} parent=1 // pred_check_branch
      %43 = sbr.rel (0) target = $region13
    $region12: #{tpu_custom_call.1} parent=1 // pred_region
      _
    $region13: #{tpu_custom_call.1} parent=1 // pred_fallthru
      _
    // Predicated region
    $region14: #{tpu_custom_call.1} parent=1 // pred_check
      _
    $region15: #{tpu_custom_call.1} parent=1 // pred_check_branch
      %45 = sbr.rel (0) target = $region17
    $region16: #{tpu_custom_call.1} parent=1 // pred_region
      %47 = vsyncadd [#allocation6], 0
      %s48 = sshll.u32 %s3, 4
      %s49 = int_to_ptr.hbm [resolvable:$true] %s48
      %s50 = sshll.u32 [#allocation7], 4
      %s51 = int_to_ptr.vmem [resolvable:$true] %s50
      %56 = dma.hbm_to_vmem [thread:$0]  %s49, 2048, %s51, [#allocation6], 128, 128, 8
    $region17: #{tpu_custom_call.1} parent=1 // pred_fallthru
      _
    // Predicated region
    $region18: #{tpu_custom_call.1} parent=1 // pred_check
      _
    $region19: #{tpu_custom_call.1} parent=1 // pred_check_branch
      %58 = sbr.rel (0) target = $region21
    $region20: #{tpu_custom_call.1} parent=1 // pred_region
      _
    $region21: #{tpu_custom_call.1} parent=1 // pred_fallthru
      _
    // Predicated region
    $region22: #{tpu_custom_call.1} parent=1 // pred_check
      _
    $region23: #{tpu_custom_call.1} parent=1 // pred_check_branch
      %60 = sbr.rel (0) target = $region25
    $region24: #{tpu_custom_call.1} parent=1 // pred_region
      %62 = vsyncadd [#allocation9], 0
      %s63 = sshll.u32 %s5, 4
      %s64 = int_to_ptr.hbm [resolvable:$true] %s63
      %s65 = sshll.u32 [#allocation8], 4
      %s66 = int_to_ptr.vmem [resolvable:$true] %s65
      %71 = dma.hbm_to_vmem [thread:$0]  %s64, 2048, %s66, [#allocation9], 128, 128, 8
    $region25: #{tpu_custom_call.1} parent=1 // pred_fallthru
      _
    // Predicated region
    $region26: #{tpu_custom_call.1} parent=1 // pred_check
      _
    $region27: #{tpu_custom_call.1} parent=1 // pred_check_branch
      %73 = sbr.rel (0) target = $region29
    $region28: #{tpu_custom_call.1} parent=1 // pred_region
      _
    $region29: #{tpu_custom_call.1} parent=1 // pred_fallthru
      _
    // Predicated region
    $region30: #{tpu_custom_call.1} parent=1 // pred_check
      _
    $region31: #{tpu_custom_call.1} parent=1 // pred_check_branch
      %75 = sbr.rel (0) target = $region33
    $region32: #{tpu_custom_call.1} parent=1 // pred_region
      %77 = vsyncadd [#allocation9], 0
      %s78 = sshll.u32 %s7, 4
      %s79 = int_to_ptr.hbm [resolvable:$true] %s78
      %s80 = sshll.u32 [#allocation10], 4
      %s81 = int_to_ptr.vmem [resolvable:$true] %s80
      %86 = dma.hbm_to_vmem [thread:$0]  %s79, 2048, %s81, [#allocation9], 128, 128, 8
    $region33: #{tpu_custom_call.1} parent=1 // pred_fallthru
      _
    // Predicated region
    $region34: #{tpu_custom_call.1} parent=1 // pred_check
      _
    $region35: #{tpu_custom_call.1} parent=1 // pred_check_branch
      %88 = sbr.rel (0) target = $region37
    $region36: #{tpu_custom_call.1} parent=1 // pred_region
      _
    $region37: #{tpu_custom_call.1} parent=1 // pred_fallthru
      _
    // Predicated region
    $region38: #{tpu_custom_call.1} parent=1 // pred_check
      _
    $region39: #{tpu_custom_call.1} parent=1 // pred_check_branch
      %90 = sbr.rel (0) target = $region41
    $region40: #{tpu_custom_call.1} parent=1 // pred_region
      %92 = dma.done [#allocation3], 128
    $region41: #{tpu_custom_call.1} parent=1 // pred_fallthru
      _
    // Predicated region
    $region42: #{tpu_custom_call.1} parent=1 // pred_check
      _
    $region43: #{tpu_custom_call.1} parent=1 // pred_check_branch
      %94 = sbr.rel (0) target = $region45
    $region44: #{tpu_custom_call.1} parent=1 // pred_region
      %96 = dma.done [#allocation6], 1664
    $region45: #{tpu_custom_call.1} parent=1 // pred_fallthru
      _
    // Predicated region
    $region46: #{tpu_custom_call.1} parent=1 // pred_check
      _
    $region47: #{tpu_custom_call.1} parent=1 // pred_check_branch
      %98 = sbr.rel (0) target = $region49
    $region48: #{tpu_custom_call.1} parent=1 // pred_region
      %100 = dma.done [#allocation6], 2048
    $region49: #{tpu_custom_call.1} parent=1 // pred_fallthru
      _
    // Predicated region
    $region50: #{tpu_custom_call.1} parent=1 // pred_check
      _
    $region51: #{tpu_custom_call.1} parent=1 // pred_check_branch
      %102 = sbr.rel (0) target = $region53
    $region52: #{tpu_custom_call.1} parent=1 // pred_region
      %104 = dma.done [#allocation9], 2048
    $region53: #{tpu_custom_call.1} parent=1 // pred_fallthru
      _
    // Predicated region
    $region54: #{tpu_custom_call.1} parent=1 // pred_check
      _
    $region55: #{tpu_custom_call.1} parent=1 // pred_check_branch
      %106 = sbr.rel (0) target = $region57
    $region56: #{tpu_custom_call.1} parent=1 // pred_region
      %108 = dma.done [#allocation9], 2048
    $region57: #{tpu_custom_call.1} parent=1 // pred_fallthru
      _
    %v109 = vld [vmem:[%s2] sm:$0x1]
    %v110 = vld [vmem:[%s4] sm:$0x1]
    %v111 = vld [vmem:[%s6] sm:$0x1]
    %v112 = vld [vmem:[%s8] sm:$0x1]
    %v113 = vld [vmem:[#allocation2] sm:$0xff]
    %v114 = vld [vmem:[#allocation5] sm:$0xff]
    %v115 = vld [vmem:[#allocation5 + $0x8] sm:$0xff]
    %v116 = vld [vmem:[#allocation5 + $0x10] sm:$0xff]
    %v117 = vld [vmem:[#allocation5 + $0x18] sm:$0xff]
    %v118 = vld [vmem:[#allocation5 + $0x20] sm:$0xff]
    %v119 = vld [vmem:[#allocation5 + $0x28] sm:$0xff]
    %v120 = vld [vmem:[#allocation5 + $0x30] sm:$0xff]
    %v121 = vld [vmem:[#allocation5 + $0x38] sm:$0xff]
    %v122 = vld [vmem:[#allocation5 + $0x40] sm:$0xff]
    %v123 = vld [vmem:[#allocation5 + $0x48] sm:$0xff]
    %v124 = vld [vmem:[#allocation5 + $0x50] sm:$0xff]
    %v125 = vld [vmem:[#allocation5 + $0x58] sm:$0xff]
    %v126 = vld [vmem:[#allocation5 + $0x60] sm:$0xf]
    %v128 = vperm.slane %v109, 0
    %vm130 = vcmask 818176
    %v132 = vsel %vm130, %v113, 0
    %vm134 = vcmask 1043456
    %v136 = vsel %vm134, %v126, 0
    %138 = vmatpush.msra.mxu0 0.0
    %139 = vmatpush.msra.mxu0 0.0
    %140 = vmatpush.msra.mxu0 0.0
    %141 = vmatpush.msra.mxu0 %v136
    %142 = vmatpush.msra.mxu0 %v125
    %143 = vmatpush.msra.mxu0 %v124
    %144 = vmatpush.msra.mxu0 %v123
    %145 = vmatpush.msra.mxu0 %v122
    %146 = vmatpush.msra.mxu0 %v121
    %147 = vmatpush.msra.mxu0 %v120
    %148 = vmatpush.msra.mxu0 %v119
    %149 = vmatpush.msra.mxu0 %v118
    %150 = vmatpush.msra.mxu0 %v117
    %151 = vmatpush.msra.mxu0 %v116
    %152 = vmatpush.msra.mxu0 %v115
    %153 = vmatpush.msra.mxu0 %v114
    %154 = vmatmul.f32.gmra.mxu0 %v132
    %v155 = vpop.f32.mrf.mxu0
    %v156 = vadd.f32 %v128, %v155
    %157 = vdwg.mxu0
    %v158 = vmax.f32 %v156, 0.0
    %v159 = vld [vmem:[#allocation7] sm:$0xff]
    %v160 = vld [vmem:[#allocation7 + $0x8] sm:$0xff]
    %v161 = vld [vmem:[#allocation7 + $0x10] sm:$0xff]
    %v162 = vld [vmem:[#allocation7 + $0x18] sm:$0xff]
    %v163 = vld [vmem:[#allocation7 + $0x20] sm:$0xff]
    %v164 = vld [vmem:[#allocation7 + $0x28] sm:$0xff]
    %v165 = vld [vmem:[#allocation7 + $0x30] sm:$0xff]
    %v166 = vld [vmem:[#allocation7 + $0x38] sm:$0xff]
    %v167 = vld [vmem:[#allocation7 + $0x40] sm:$0xff]
    %v168 = vld [vmem:[#allocation7 + $0x48] sm:$0xff]
    %v169 = vld [vmem:[#allocation7 + $0x50] sm:$0xff]
    %v170 = vld [vmem:[#allocation7 + $0x58] sm:$0xff]
    %v171 = vld [vmem:[#allocation7 + $0x60] sm:$0xff]
    %v172 = vld [vmem:[#allocation7 + $0x68] sm:$0xff]
    %v173 = vld [vmem:[#allocation7 + $0x70] sm:$0xff]
    %v174 = vld [vmem:[#allocation7 + $0x78] sm:$0xff]
    %v176 = vperm.slane %v110, 0
    %178 = vmatpush.msra.mxu0 %v174
    %179 = vmatpush.msra.mxu0 %v173
    %180 = vmatpush.msra.mxu0 %v172
    %181 = vmatpush.msra.mxu0 %v171
    %182 = vmatpush.msra.mxu0 %v170
    %183 = vmatpush.msra.mxu0 %v169
    %184 = vmatpush.msra.mxu0 %v168
    %185 = vmatpush.msra.mxu0 %v167
    %186 = vmatpush.msra.mxu0 %v166
    %187 = vmatpush.msra.mxu0 %v165
    %188 = vmatpush.msra.mxu0 %v164
    %189 = vmatpush.msra.mxu0 %v163
    %190 = vmatpush.msra.mxu0 %v162
    %191 = vmatpush.msra.mxu0 %v161
    %192 = vmatpush.msra.mxu0 %v160
    %193 = vmatpush.msra.mxu0 %v159
    %194 = vmatmul.f32.gmra.mxu0 %v158
    %v195 = vpop.f32.mrf.mxu0
    %v196 = vadd.f32 %v176, %v195
    %197 = vdwg.mxu0
    %v198 = vmax.f32 %v196, 0.0
    %v199 = vld [vmem:[#allocation8] sm:$0xff]
    %v200 = vld [vmem:[#allocation8 + $0x8] sm:$0xff]
    %v201 = vld [vmem:[#allocation8 + $0x10] sm:$0xff]
    %v202 = vld [vmem:[#allocation8 + $0x18] sm:$0xff]
    %v203 = vld [vmem:[#allocation8 + $0x20] sm:$0xff]
    %v204 = vld [vmem:[#allocation8 + $0x28] sm:$0xff]
    %v205 = vld [vmem:[#allocation8 + $0x30] sm:$0xff]
    %v206 = vld [vmem:[#allocation8 + $0x38] sm:$0xff]
    %v207 = vld [vmem:[#allocation8 + $0x40] sm:$0xff]
    %v208 = vld [vmem:[#allocation8 + $0x48] sm:$0xff]
    %v209 = vld [vmem:[#allocation8 + $0x50] sm:$0xff]
    %v210 = vld [vmem:[#allocation8 + $0x58] sm:$0xff]
    %v211 = vld [vmem:[#allocation8 + $0x60] sm:$0xff]
    %v212 = vld [vmem:[#allocation8 + $0x68] sm:$0xff]
    %v213 = vld [vmem:[#allocation8 + $0x70] sm:$0xff]
    %v214 = vld [vmem:[#allocation8 + $0x78] sm:$0xff]
    %v216 = vperm.slane %v111, 0
    %218 = vmatpush.msra.mxu0 %v214
    %219 = vmatpush.msra.mxu0 %v213
    %220 = vmatpush.msra.mxu0 %v212
    %221 = vmatpush.msra.mxu0 %v211
    %222 = vmatpush.msra.mxu0 %v210
    %223 = vmatpush.msra.mxu0 %v209
    %224 = vmatpush.msra.mxu0 %v208
    %225 = vmatpush.msra.mxu0 %v207
    %226 = vmatpush.msra.mxu0 %v206
    %227 = vmatpush.msra.mxu0 %v205
    %228 = vmatpush.msra.mxu0 %v204
    %229 = vmatpush.msra.mxu0 %v203
    %230 = vmatpush.msra.mxu0 %v202
    %231 = vmatpush.msra.mxu0 %v201
    %232 = vmatpush.msra.mxu0 %v200
    %233 = vmatpush.msra.mxu0 %v199
    %234 = vmatmul.f32.gmra.mxu0 %v198
    %v235 = vpop.f32.mrf.mxu0
    %v236 = vadd.f32 %v216, %v235
    %237 = vdwg.mxu0
    %v238 = vmax.f32 %v236, 0.0
    %v239 = vld [vmem:[#allocation10] sm:$0xff]
    %v240 = vld [vmem:[#allocation10 + $0x8] sm:$0xff]
    %v241 = vld [vmem:[#allocation10 + $0x10] sm:$0xff]
    %v242 = vld [vmem:[#allocation10 + $0x18] sm:$0xff]
    %v243 = vld [vmem:[#allocation10 + $0x20] sm:$0xff]
    %v244 = vld [vmem:[#allocation10 + $0x28] sm:$0xff]
    %v245 = vld [vmem:[#allocation10 + $0x30] sm:$0xff]
    %v246 = vld [vmem:[#allocation10 + $0x38] sm:$0xff]
    %v247 = vld [vmem:[#allocation10 + $0x40] sm:$0xff]
    %v248 = vld [vmem:[#allocation10 + $0x48] sm:$0xff]
    %v249 = vld [vmem:[#allocation10 + $0x50] sm:$0xff]
    %v250 = vld [vmem:[#allocation10 + $0x58] sm:$0xff]
    %v251 = vld [vmem:[#allocation10 + $0x60] sm:$0xff]
    %v252 = vld [vmem:[#allocation10 + $0x68] sm:$0xff]
    %v253 = vld [vmem:[#allocation10 + $0x70] sm:$0xff]
    %v254 = vld [vmem:[#allocation10 + $0x78] sm:$0xff]
    %v256 = vperm.slane %v112, 0
    %258 = vmatpush.msra.mxu0 %v254
    %259 = vmatpush.msra.mxu0 %v253
    %260 = vmatpush.msra.mxu0 %v252
    %261 = vmatpush.msra.mxu0 %v251
    %262 = vmatpush.msra.mxu0 %v250
    %263 = vmatpush.msra.mxu0 %v249
    %264 = vmatpush.msra.mxu0 %v248
    %265 = vmatpush.msra.mxu0 %v247
    %266 = vmatpush.msra.mxu0 %v246
    %267 = vmatpush.msra.mxu0 %v245
    %268 = vmatpush.msra.mxu0 %v244
    %269 = vmatpush.msra.mxu0 %v243
    %270 = vmatpush.msra.mxu0 %v242
    %271 = vmatpush.msra.mxu0 %v241
    %272 = vmatpush.msra.mxu0 %v240
    %273 = vmatpush.msra.mxu0 %v239
    %274 = vmatmul.f32.gmra.mxu0 %v238
    %v275 = vpop.f32.mrf.mxu0
    %v276 = vadd.f32 %v256, %v275
    %277 = vdwg.mxu0
    %v278 = vmax.f32 %v276, 0.0
    %279 = vst [vmem:[#allocation11] sm:$0xff] %v278
    // Predicated region
    $region58: #{tpu_custom_call.1} parent=1 // pred_check
      _
    $region59: #{tpu_custom_call.1} parent=1 // pred_check_branch
      %281 = sbr.rel (0) target = $region61
    $region60: #{tpu_custom_call.1} parent=1 // pred_region
      %283 = vsyncadd [#allocation4], 0
      %s285 = sshll.u32 [#allocation11], 4
      %s286 = int_to_ptr.vmem [resolvable:$true] %s285
      %s287 = sshll.u32 %s9, 4
      %s288 = int_to_ptr.hbm [resolvable:$true] %s287
      %290 = dma.vmem_to_hbm [thread:$0]  %s286, 128, %s288, [#allocation4]
    $region61: #{tpu_custom_call.1} parent=1 // pred_fallthru
      _
    // Predicated region
    $region62: #{tpu_custom_call.1} parent=1 // pred_check
      _
    $region63: #{tpu_custom_call.1} parent=1 // pred_check_branch
      %292 = sbr.rel (0) target = $region65
    $region64: #{tpu_custom_call.1} parent=1 // pred_region
      %294 = dma.done [#allocation4], 128
    $region65: #{tpu_custom_call.1} parent=1 // pred_fallthru
      _
    %295 = vsyncpa [#allocation3], 1
    %296 = vsyncpa [#allocation6], 1
    %297 = vsyncpa [#allocation9], 1
    %298 = vsyncpa [#allocation4], 1

</llo_original>
